<compile_context>
chip_gen: v6e
topology: v6e:2x2x1
jax: 0.10.0
libtpu: 0.0.40
codegen_flags: <defaults>
</compile_context>

<pallas_src>
import functools

import jax
import jax.numpy as jnp
from jax.experimental import pallas as pl
from jax.experimental.pallas import tpu as pltpu


def _cat_attention_kernel(targ_ref, src_ref, mask_ref, wt_ref, ws_ref, v_ref,
                          attw_ref, out_ref):
    bb, s, h = src_ref.shape
    n_out = v_ref.shape[-1]

    src = src_ref[...]                                            # (bb, S, H)
    targ = targ_ref[...]                                          # (bb, H)
    mask = mask_ref[...]                                          # (bb, S)

    # cat(targ_rep, src) @ W.T == targ @ W[:, :H].T + src @ W[:, H:].T
    t_proj = jnp.dot(targ, wt_ref[...],
                     preferred_element_type=jnp.float32)          # (bb, n_out)
    s_proj = jnp.dot(src.reshape(bb * s, h), ws_ref[...],
                     preferred_element_type=jnp.float32)          # (bb*S, n_out)
    th = jnp.tanh(s_proj.reshape(bb, s, n_out) + t_proj[:, None, :])

    # e[b, s] = sum_o V[o] * th[b, s, o]
    e = jnp.sum(th * v_ref[0], axis=-1)                           # (bb, S)

    # torch: mask[mask == 0] = -1e8 ; e = e * mask
    e = e * jnp.where(mask == 0.0, jnp.float32(-1e8), mask)

    # softmax over the sequence (lane) axis
    m = jnp.max(e, axis=-1, keepdims=True)
    p = jnp.exp(e - m)
    att = p * pl.reciprocal(jnp.sum(p, axis=-1, keepdims=True), approx=False)
    attw_ref[...] = att                                           # (bb, S)

    # hidden_output[b] = att[b] @ src[b]
    out = jnp.einsum("bqs,bsh->bqh", att[:, None, :], src,
                     preferred_element_type=jnp.float32)          # (bb, 1, H)
    out_ref[...] = out[:, 0, :]                                   # (bb, H)


@functools.partial(jax.jit, static_argnames=("block_b",))
def cat_attention(hidden_targ, hidden_src, mask, w_weight, v_param, *, block_b=8):
    """Pallas implementation of CatAttention.forward.

    Args:
      hidden_targ: (b, H)
      hidden_src:  (b, S, H)
      mask:        (b, S)       (0 = masked position; torch semantics reproduced)
      w_weight:    (n_out, 2H)  -- weight of nn.Linear(2H, n_out, bias=False)
      v_param:     (n_out,)
      block_b:     batch rows processed per grid step (multiple of 8 when b > block_b)
    Returns:
      (att_weights (b, S), hidden_output (b, H))
    """
    b, s, h = hidden_src.shape
    n_out = v_param.shape[0]
    assert hidden_targ.shape == (b, h)
    assert mask.shape == (b, s)
    assert w_weight.shape == (n_out, 2 * h)

    f32 = jnp.float32
    # Batch-invariant prep hoisted out of the kernel (layout plumbing, done once):
    wt = w_weight[:, :h].T.astype(f32)            # (H, n_out)  targ half of W
    ws = w_weight[:, h:].T.astype(f32)            # (H, n_out)  src  half of W
    v = v_param.astype(f32).reshape(1, n_out)     # (1, n_out)

    targ = hidden_targ.astype(f32)
    src = hidden_src.astype(f32)
    msk = mask.astype(f32)

    # Batch block: whole batch if small, otherwise a multiple of 8 (keeps the
    # (8, 128) block rule satisfied after padding the batch dim).
    if b <= block_b:
        bb = b
    else:
        bb = max(8, (block_b // 8) * 8)
    b_pad = pl.cdiv(b, bb) * bb
    if b_pad != b:
        pad = b_pad - b
        targ = jnp.pad(targ, ((0, pad), (0, 0)))
        src = jnp.pad(src, ((0, pad), (0, 0), (0, 0)))
        msk = jnp.pad(msk, ((0, pad), (0, 0)))   # zeros -> harmless padded rows

    flops = b * (2 * h * n_out + 2 * s * h * n_out + 2 * s * n_out + 2 * s * h)
    transcendentals = b * (s * n_out + s)          # tanh + exp
    bytes_accessed = 4 * (b * h + b * s * h + b * s
                          + 2 * h * n_out + n_out
                          + b * s + b * h)

    att, out = pl.pallas_call(
        _cat_attention_kernel,
        grid=(b_pad // bb,),
        in_specs=[
            pl.BlockSpec((bb, h), lambda i: (i, 0)),        # hidden_targ block
            pl.BlockSpec((bb, s, h), lambda i: (i, 0, 0)),  # hidden_src block
            pl.BlockSpec((bb, s), lambda i: (i, 0)),        # mask block
            pl.BlockSpec((h, n_out), lambda i: (0, 0)),     # W_t (VMEM-resident)
            pl.BlockSpec((h, n_out), lambda i: (0, 0)),     # W_s (VMEM-resident)
            pl.BlockSpec((1, n_out), lambda i: (0, 0)),     # V   (VMEM-resident)
        ],
        out_specs=(
            pl.BlockSpec((bb, s), lambda i: (i, 0)),        # att_weights
            pl.BlockSpec((bb, h), lambda i: (i, 0)),        # hidden_output
        ),
        out_shape=(
            jax.ShapeDtypeStruct((b_pad, s), f32),
            jax.ShapeDtypeStruct((b_pad, h), f32),
        ),
        compiler_params=pltpu.CompilerParams(
            dimension_semantics=("parallel",)),
        cost_estimate=pl.CostEstimate(
            flops=flops,
            transcendentals=transcendentals,
            bytes_accessed=bytes_accessed),
    )(targ, src, msk, wt, ws, v)

    return att[:b], out[:b]


if __name__ == "__main__":
    # Small deterministic shapes consistent with the module.
    B, S, H, N_OUT = 2, 8, 32, 16

    key = jax.random.PRNGKey(0)
    k_t, k_s, k_w, k_v = jax.random.split(key, 4)

    hidden_targ = jax.random.normal(k_t, (B, H), dtype=jnp.float32)
    hidden_src = jax.random.normal(k_s, (B, S, H), dtype=jnp.float32)
    lengths = jnp.array([[S], [5]], dtype=jnp.int32)
    mask = (jnp.arange(S)[None, :] < lengths).astype(jnp.float32)      # (B, S)

    bound = 1.0 / float(jnp.sqrt(2.0 * H))
    w_weight = jax.random.uniform(k_w, (N_OUT, 2 * H), dtype=jnp.float32,
                                  minval=-bound, maxval=bound)
    v_param = jax.random.uniform(k_v, (N_OUT,), dtype=jnp.float32)     # torch.rand

    att, hidden_out = cat_attention(hidden_targ, hidden_src, mask, w_weight, v_param)
    jax.block_until_ready((att, hidden_out))

    # Pure-JAX reference mirroring the PyTorch forward (high precision).
    hp = jax.lax.Precision.HIGHEST
    targ_rep = jnp.repeat(hidden_targ[:, None, :], S, axis=1)          # (B, S, H)
    cat = jnp.concatenate([targ_rep, hidden_src], axis=-1)             # (B, S, 2H)
    wsh = jnp.einsum("bsk,ok->bso", cat, w_weight, precision=hp)
    e_ref = jnp.einsum("o,bso->bs", v_param, jnp.tanh(wsh), precision=hp)
    mask_eff = jnp.where(mask == 0.0, jnp.float32(-1e8), mask)
    e_ref = e_ref * mask_eff
    att_expected = jax.nn.softmax(e_ref, axis=1)
    out_expected = jnp.einsum("bs,bsh->bh", att_expected, hidden_src, precision=hp)

    assert att.shape == (B, S) and hidden_out.shape == hidden_targ.shape
    assert jnp.allclose(att, att_expected, atol=1e-4, rtol=1e-4), (
        float(jnp.max(jnp.abs(att - att_expected))))
    assert jnp.allclose(hidden_out, out_expected, atol=1e-4, rtol=1e-4), (
        float(jnp.max(jnp.abs(hidden_out - out_expected))))

    print("KERNEL_OK")
</pallas_src>

<mosaic_0001>
module attributes {stable_mosaic.version = 11 : i64} {
  func.func @_cat_attention_kernel(%arg0: i32, %arg1: memref<2x32xf32, #tpu.memory_space<vmem>>, %arg2: memref<2x8x32xf32, #tpu.memory_space<vmem>>, %arg3: memref<2x8xf32, #tpu.memory_space<vmem>>, %arg4: memref<32x16xf32, #tpu.memory_space<vmem>>, %arg5: memref<32x16xf32, #tpu.memory_space<vmem>>, %arg6: memref<1x16xf32, #tpu.memory_space<vmem>>, %arg7: memref<2x8xf32, #tpu.memory_space<vmem>>, %arg8: memref<2x32xf32, #tpu.memory_space<vmem>>) attributes {dimension_semantics = [#tpu.dimension_semantics<parallel>], iteration_bounds = array<i64: 1>, scalar_prefetch = 0 : i64, scratch_operands = 0 : i64, tpu.core_type = #tpu.core_type<tc>, window_params = [{transform_indices = @transform_0, window_bounds = array<i64: 2, 32>}, {transform_indices = @transform_1, window_bounds = array<i64: 2, 8, 32>}, {transform_indices = @transform_2, window_bounds = array<i64: 2, 8>}, {pipeline_mode = #tpu.pipeline_mode<synchronous>, transform_indices = @transform_3, window_bounds = array<i64: 32, 16>}, {pipeline_mode = #tpu.pipeline_mode<synchronous>, transform_indices = @transform_4, window_bounds = array<i64: 32, 16>}, {pipeline_mode = #tpu.pipeline_mode<synchronous>, transform_indices = @transform_5, window_bounds = array<i64: 1, 16>}, {transform_indices = @transform_6, window_bounds = array<i64: 2, 8>}, {transform_indices = @transform_7, window_bounds = array<i64: 2, 32>}]} {
    %c0 = arith.constant 0 : index
    %c0_0 = arith.constant 0 : index
    %c0_1 = arith.constant 0 : index
    %0 = vector.load %arg2[%c0, %c0_0, %c0_1] : memref<2x8x32xf32, #tpu.memory_space<vmem>>, vector<2x8x32xf32>
    %c0_2 = arith.constant 0 : index
    %c0_3 = arith.constant 0 : index
    %1 = vector.load %arg1[%c0_2, %c0_3] : memref<2x32xf32, #tpu.memory_space<vmem>>, vector<2x32xf32>
    %c0_4 = arith.constant 0 : index
    %c0_5 = arith.constant 0 : index
    %2 = vector.load %arg3[%c0_4, %c0_5] : memref<2x8xf32, #tpu.memory_space<vmem>>, vector<2x8xf32>
    %c0_6 = arith.constant 0 : index
    %c0_7 = arith.constant 0 : index
    %3 = vector.load %arg4[%c0_6, %c0_7] : memref<32x16xf32, #tpu.memory_space<vmem>>, vector<32x16xf32>
    %cst = arith.constant dense<0.000000e+00> : vector<2x16xf32>
    %4 = tpu.matmul %1, %3, %cst {dimension_numbers = #tpu.dot_dimension_numbers<[1], [0], [0], [1], [0, 0, 1, 1], [], []>} : vector<2x32xf32>, vector<32x16xf32>, vector<2x16xf32> -> vector<2x16xf32>
    %5 = vector.shape_cast %0 : vector<2x8x32xf32> to vector<16x32xf32>
    %c0_8 = arith.constant 0 : index
    %c0_9 = arith.constant 0 : index
    %6 = vector.load %arg5[%c0_8, %c0_9] : memref<32x16xf32, #tpu.memory_space<vmem>>, vector<32x16xf32>
    %cst_10 = arith.constant dense<0.000000e+00> : vector<16x16xf32>
    %7 = tpu.matmul %5, %6, %cst_10 {dimension_numbers = #tpu.dot_dimension_numbers<[1], [0], [0], [1], [0, 0, 1, 1], [], []>} : vector<16x32xf32>, vector<32x16xf32>, vector<16x16xf32> -> vector<16x16xf32>
    %8 = vector.shape_cast %7 : vector<16x16xf32> to vector<2x8x16xf32>
    %9 = vector.shape_cast %4 : vector<2x16xf32> to vector<2x1x16xf32>
    %10 = vector.broadcast %9 : vector<2x1x16xf32> to vector<2x8x16xf32>
    %11 = arith.addf %8, %10 : vector<2x8x16xf32>
    %12 = math.tanh %11 : vector<2x8x16xf32>
    %c0_11 = arith.constant 0 : index
    %c0_12 = arith.constant 0 : index
    %13 = vector.load %arg6[%c0_11, %c0_12] : memref<1x16xf32, #tpu.memory_space<vmem>>, vector<1x16xf32>
    %14 = vector.shape_cast %13 : vector<1x16xf32> to vector<16xf32>
    %15 = vector.shape_cast %14 : vector<16xf32> to vector<1x1x16xf32>
    %16 = vector.broadcast %15 : vector<1x1x16xf32> to vector<2x8x16xf32>
    %17 = arith.mulf %12, %16 : vector<2x8x16xf32>
    %cst_13 = arith.constant dense<0.000000e+00> : vector<2x8xf32>
    %18 = vector.multi_reduction <add>, %17, %cst_13 [2] : vector<2x8x16xf32> to vector<2x8xf32>
    %cst_14 = arith.constant 0.000000e+00 : f32
    %19 = vector.broadcast %cst_14 : f32 to vector<2x8xf32>
    %20 = arith.cmpf oeq, %2, %19 : vector<2x8xf32>
    %cst_15 = arith.constant -1.000000e+08 : f32
    %21 = vector.broadcast %cst_15 : f32 to vector<2x8xf32>
    %22 = arith.select %20, %21, %2 : vector<2x8xi1>, vector<2x8xf32>
    %23 = arith.mulf %18, %22 : vector<2x8xf32>
    %cst_16 = arith.constant dense<0xFF800000> : vector<2xf32>
    %24 = vector.multi_reduction <maximumf>, %23, %cst_16 [1] : vector<2x8xf32> to vector<2xf32>
    %25 = vector.shape_cast %24 : vector<2xf32> to vector<2x1xf32>
    %26 = vector.broadcast %25 : vector<2x1xf32> to vector<2x8xf32>
    %27 = arith.subf %23, %26 : vector<2x8xf32>
    %28 = math.exp %27 : vector<2x8xf32>
    %cst_17 = arith.constant dense<0.000000e+00> : vector<2xf32>
    %29 = vector.multi_reduction <add>, %28, %cst_17 [1] : vector<2x8xf32> to vector<2xf32>
    %30 = vector.shape_cast %29 : vector<2xf32> to vector<2x1xf32>
    %31 = tpu.reciprocal %30 : vector<2x1xf32> -> vector<2x1xf32>
    %32 = vector.broadcast %31 : vector<2x1xf32> to vector<2x8xf32>
    %33 = arith.mulf %28, %32 : vector<2x8xf32>
    %c0_18 = arith.constant 0 : index
    %c0_19 = arith.constant 0 : index
    %34 = vector.load %arg7[%c0_18, %c0_19] : memref<2x8xf32, #tpu.memory_space<vmem>>, vector<2x8xf32>
    tpu.vector_store %arg7[%c0_18, %c0_19], %33 {strides = array<i32>} : memref<2x8xf32, #tpu.memory_space<vmem>>, vector<2x8xf32>,
    %35 = vector.shape_cast %33 : vector<2x8xf32> to vector<2x1x8xf32>
    "tpu.trace_start"() <{level = 10 : i32, message = "bqs,bsh->bqh"}> : () -> ()
    %cst_20 = arith.constant dense<0.000000e+00> : vector<2x1x32xf32>
    %36 = tpu.matmul %35, %0, %cst_20 {dimension_numbers = #tpu.dot_dimension_numbers<[2], [1], [1], [2], [0, 0, 0, 1, 1, 2], [0], [0]>} : vector<2x1x8xf32>, vector<2x8x32xf32>, vector<2x1x32xf32> -> vector<2x1x32xf32>
    "tpu.trace_stop"() : () -> ()
    %37 = vector.shape_cast %36 : vector<2x1x32xf32> to vector<2x32xf32>
    %c0_21 = arith.constant 0 : index
    %c0_22 = arith.constant 0 : index
    %38 = vector.load %arg8[%c0_21, %c0_22] : memref<2x32xf32, #tpu.memory_space<vmem>>, vector<2x32xf32>
    tpu.vector_store %arg8[%c0_21, %c0_22], %37 {strides = array<i32>} : memref<2x32xf32, #tpu.memory_space<vmem>>, vector<2x32xf32>,
    return
  }
  func.func @transform_0(%arg0: i32) -> (i32, i32) {
    %c0_i32 = arith.constant 0 : i32
    %c0_i32_0 = arith.constant 0 : i32
    return %arg0, %c0_i32 : i32, i32
  }
  func.func @transform_1(%arg0: i32) -> (i32, i32, i32) {
    %c0_i32 = arith.constant 0 : i32
    %c0_i32_0 = arith.constant 0 : i32
    %c0_i32_1 = arith.constant 0 : i32
    return %arg0, %c0_i32, %c0_i32_0 : i32, i32, i32
  }
  func.func @transform_2(%arg0: i32) -> (i32, i32) {
    %c0_i32 = arith.constant 0 : i32
    %c0_i32_0 = arith.constant 0 : i32
    return %arg0, %c0_i32 : i32, i32
  }
  func.func @transform_3(%arg0: i32) -> (i32, i32) {
    %c0_i32 = arith.constant 0 : i32
    %c0_i32_0 = arith.constant 0 : i32
    %c0_i32_1 = arith.constant 0 : i32
    return %c0_i32, %c0_i32_0 : i32, i32
  }
  func.func @transform_4(%arg0: i32) -> (i32, i32) {
    %c0_i32 = arith.constant 0 : i32
    %c0_i32_0 = arith.constant 0 : i32
    %c0_i32_1 = arith.constant 0 : i32
    return %c0_i32, %c0_i32_0 : i32, i32
  }
  func.func @transform_5(%arg0: i32) -> (i32, i32) {
    %c0_i32 = arith.constant 0 : i32
    %c0_i32_0 = arith.constant 0 : i32
    %c0_i32_1 = arith.constant 0 : i32
    return %c0_i32, %c0_i32_0 : i32, i32
  }
  func.func @transform_6(%arg0: i32) -> (i32, i32) {
    %c0_i32 = arith.constant 0 : i32
    %c0_i32_0 = arith.constant 0 : i32
    return %arg0, %c0_i32 : i32, i32
  }
  func.func @transform_7(%arg0: i32) -> (i32, i32) {
    %c0_i32 = arith.constant 0 : i32
    %c0_i32_0 = arith.constant 0 : i32
    return %arg0, %c0_i32 : i32, i32
  }
}

</mosaic_0001>

<llo_original>
// kernel: cat_attention.1
$region0: #{cat_attention.1}
  #allocation0 [shape = 'u32[]', space=smem, size = 0x4, offset = 0x4, fixed_abs, tag = 'smem constant byte address 0x4 - core index']
  #allocation1 [shape = 'u32[144,128]{1,0:T(1,128)}', space=vmem, size = 0x12000, scoped, tag = 'internal scratch']
  %s0 = inlined_call_operand.vmem [shape: f32[2,32], index: 0, kind: input, shape index: {}]
  %s1 = inlined_call_operand.vmem [shape: f32[2,8,32], index: 1, kind: input, shape index: {}]
  %s2 = inlined_call_operand.vmem [shape: f32[2,8], index: 2, kind: input, shape index: {}]
  %s3 = inlined_call_operand.vmem [shape: f32[32,16], index: 3, kind: input, shape index: {}]
  %s4 = inlined_call_operand.vmem [shape: f32[32,16], index: 4, kind: input, shape index: {}]
  %s5 = inlined_call_operand.vmem [shape: f32[1,16], index: 5, kind: input, shape index: {}]
  %s6 = inlined_call_operand.hbm [shape: f32[2,8], index: 6, kind: output, shape index: {0}]
  %s7 = inlined_call_operand.hbm [shape: f32[2,32], index: 7, kind: output, shape index: {1}]
  %8 = xla_tuple %s6, %s7
  %s9 = sld [smem:[#allocation0]]
  $region42: #{cat_attention.1} parent=0
    _
  %s11 = ssub.s32 1, %s9
  %s12 = scalar_select 0, %s11, %s9
  $region1: #{cat_attention.1} parent=0
    #allocation2 [shape = 'u8[1024]{0}', space=vmem, size = 0x400, scoped, tag = 'output window, operand 0, single buffered']
    #allocation3 [shape = 's32[1]{0}', space=sflag, size = 0x4, scoped, tag = 'scoped memory for cat_attention.1']
    #allocation4 [shape = 'u8[1024]{0}', space=vmem, size = 0x400, scoped, tag = 'output window, operand 1, single buffered']
    #allocation5 [shape = 's32[1]{0}', space=sflag, size = 0x4, scoped, tag = 'scoped memory for cat_attention.1']
    %13 = vsyncpa [#allocation3], 0
    %14 = vsyncpa [#allocation5], 0
    // Predicated region
    $region2: #{cat_attention.1} parent=1 // pred_check
      _
    $region3: #{cat_attention.1} parent=1 // pred_check_branch
      %16 = sbr.rel (0) target = $region5
    $region4: #{cat_attention.1} parent=1 // pred_region
      _
    $region5: #{cat_attention.1} parent=1 // pred_fallthru
      _
    // Predicated region
    $region6: #{cat_attention.1} parent=1 // pred_check
      _
    $region7: #{cat_attention.1} parent=1 // pred_check_branch
      %18 = sbr.rel (0) target = $region9
    $region8: #{cat_attention.1} parent=1 // pred_region
      _
    $region9: #{cat_attention.1} parent=1 // pred_fallthru
      _
    // Predicated region
    $region10: #{cat_attention.1} parent=1 // pred_check
      _
    $region11: #{cat_attention.1} parent=1 // pred_check_branch
      %20 = sbr.rel (0) target = $region13
    $region12: #{cat_attention.1} parent=1 // pred_region
      _
    $region13: #{cat_attention.1} parent=1 // pred_fallthru
      _
    // Predicated region
    $region14: #{cat_attention.1} parent=1 // pred_check
      _
    $region15: #{cat_attention.1} parent=1 // pred_check_branch
      %22 = sbr.rel (0) target = $region17
    $region16: #{cat_attention.1} parent=1 // pred_region
      _
    $region17: #{cat_attention.1} parent=1 // pred_fallthru
      _
    // Predicated region
    $region18: #{cat_attention.1} parent=1 // pred_check
      _
    $region19: #{cat_attention.1} parent=1 // pred_check_branch
      %24 = sbr.rel (0) target = $region21
    $region20: #{cat_attention.1} parent=1 // pred_region
      _
    $region21: #{cat_attention.1} parent=1 // pred_fallthru
      _
    // Predicated region
    $region22: #{cat_attention.1} parent=1 // pred_check
      _
    $region23: #{cat_attention.1} parent=1 // pred_check_branch
      %26 = sbr.rel (0) target = $region25
    $region24: #{cat_attention.1} parent=1 // pred_region
      _
    $region25: #{cat_attention.1} parent=1 // pred_fallthru
      _
    %v27 = vld [vmem:[%s1] sm:$0xff]
    %v28 = vld [vmem:[%s1 + $0x8] sm:$0xff]
    %v29 = vld [vmem:[%s0] sm:$0x3]
    %v30 = vld [vmem:[%s2] sm:$0x3]
    %v31 = vld [vmem:[%s3] sm:$0xff]
    %v32 = vld [vmem:[%s3 + $0x8] sm:$0xff]
    %v33 = vld [vmem:[%s3 + $0x10] sm:$0xff]
    %v34 = vld [vmem:[%s3 + $0x18] sm:$0xff]
    %vm35 = vcmask 261120
    %v37 = vsel %vm35, %v29, 0
    %39 = vmatprep.subr.mxu0 0.0
    %40 = vmatpush1.msra.mxu0 0.0
    %41 = vmatprep.subr.mxu0 0.0
    %42 = vmatpush1.msra.mxu0 0.0
    %43 = vmatprep.subr.mxu0 0.0
    %44 = vmatpush1.msra.mxu0 0.0
    %45 = vmatprep.subr.mxu0 0.0
    %46 = vmatpush1.msra.mxu0 0.0
    %47 = vmatprep.subr.mxu0 0.0
    %48 = vmatpush1.msra.mxu0 0.0
    %49 = vmatprep.subr.mxu0 0.0
    %50 = vmatpush1.msra.mxu0 0.0
    %51 = vmatprep.subr.mxu0 0.0
    %52 = vmatpush1.msra.mxu0 0.0
    %53 = vmatprep.subr.mxu0 0.0
    %54 = vmatpush1.msra.mxu0 0.0
    %55 = vmatprep.subr.mxu0 0.0
    %56 = vmatpush1.msra.mxu0 0.0
    %57 = vmatprep.subr.mxu0 0.0
    %58 = vmatpush1.msra.mxu0 0.0
    %59 = vmatprep.subr.mxu0 0.0
    %60 = vmatpush1.msra.mxu0 0.0
    %61 = vmatprep.subr.mxu0 0.0
    %62 = vmatpush1.msra.mxu0 0.0
    %63 = vmatprep.subr.mxu0 0.0
    %64 = vmatpush1.msra.mxu0 %v34
    %65 = vmatprep.subr.mxu0 0.0
    %66 = vmatpush1.msra.mxu0 %v33
    %67 = vmatprep.subr.mxu0 0.0
    %68 = vmatpush1.msra.mxu0 %v32
    %69 = vmatprep.subr.mxu0 0.0
    %70 = vmatpush1.msra.mxu0 %v31
    %71 = vmatprep.subr.mxu0 0.0
    %72 = vmatpush2.msra.mxu0 0.0
    %73 = vmatprep.subr.mxu0 0.0
    %74 = vmatpush2.msra.mxu0 0.0
    %75 = vmatprep.subr.mxu0 0.0
    %76 = vmatpush2.msra.mxu0 0.0
    %77 = vmatprep.subr.mxu0 0.0
    %78 = vmatpush2.msra.mxu0 0.0
    %79 = vmatprep.subr.mxu0 0.0
    %80 = vmatpush2.msra.mxu0 0.0
    %81 = vmatprep.subr.mxu0 0.0
    %82 = vmatpush2.msra.mxu0 0.0
    %83 = vmatprep.subr.mxu0 0.0
    %84 = vmatpush2.msra.mxu0 0.0
    %85 = vmatprep.subr.mxu0 0.0
    %86 = vmatpush2.msra.mxu0 0.0
    %87 = vmatprep.subr.mxu0 0.0
    %88 = vmatpush2.msra.mxu0 0.0
    %89 = vmatprep.subr.mxu0 0.0
    %90 = vmatpush2.msra.mxu0 0.0
    %91 = vmatprep.subr.mxu0 0.0
    %92 = vmatpush2.msra.mxu0 0.0
    %93 = vmatprep.subr.mxu0 0.0
    %94 = vmatpush2.msra.mxu0 0.0
    %95 = vmatprep.subr.mxu0 0.0
    %96 = vmatpush2.msra.mxu0 0.0
    %97 = vmatprep.subr.mxu0 0.0
    %98 = vmatpush2.msra.mxu0 0.0
    %99 = vmatprep.subr.mxu0 0.0
    %100 = vmatpush2.msra.mxu0 0.0
    %101 = vmatprep.subr.mxu0 0.0
    %102 = vmatpush2.msra.mxu0 0.0
    %103 = vmatprep.mubr.f32.mxu0 0.0
    %104 = vmatmul.mubr.f32.gmra.mxu0 %v37
    %v105 = vpop.f32.mrf.mxu0
    %v106 = vadd.f32 0.0, %v105
    %v107 = vpop.f32.mrf.mxu0
    %108 = vdwg.mxu0
    %v109 = vld [vmem:[%s4] sm:$0xff]
    %v110 = vld [vmem:[%s4 + $0x8] sm:$0xff]
    %v111 = vld [vmem:[%s4 + $0x10] sm:$0xff]
    %v112 = vld [vmem:[%s4 + $0x18] sm:$0xff]
    %v114 = vsel %vm35, %v27, 0
    %v117 = vsel %vm35, %v28, 0
    %119 = vmatprep.subr.mxu0 0.0
    %120 = vmatpush1.msra.mxu0 0.0
    %121 = vmatprep.subr.mxu0 0.0
    %122 = vmatpush1.msra.mxu0 0.0
    %123 = vmatprep.subr.mxu0 0.0
    %124 = vmatpush1.msra.mxu0 0.0
    %125 = vmatprep.subr.mxu0 0.0
    %126 = vmatpush1.msra.mxu0 0.0
    %127 = vmatprep.subr.mxu0 0.0
    %128 = vmatpush1.msra.mxu0 0.0
    %129 = vmatprep.subr.mxu0 0.0
    %130 = vmatpush1.msra.mxu0 0.0
    %131 = vmatprep.subr.mxu0 0.0
    %132 = vmatpush1.msra.mxu0 0.0
    %133 = vmatprep.subr.mxu0 0.0
    %134 = vmatpush1.msra.mxu0 0.0
    %135 = vmatprep.subr.mxu0 0.0
    %136 = vmatpush1.msra.mxu0 0.0
    %137 = vmatprep.subr.mxu0 0.0
    %138 = vmatpush1.msra.mxu0 0.0
    %139 = vmatprep.subr.mxu0 0.0
    %140 = vmatpush1.msra.mxu0 0.0
    %141 = vmatprep.subr.mxu0 0.0
    %142 = vmatpush1.msra.mxu0 0.0
    %143 = vmatprep.subr.mxu0 0.0
    %144 = vmatpush1.msra.mxu0 %v112
    %145 = vmatprep.subr.mxu0 0.0
    %146 = vmatpush1.msra.mxu0 %v111
    %147 = vmatprep.subr.mxu0 0.0
    %148 = vmatpush1.msra.mxu0 %v110
    %149 = vmatprep.subr.mxu0 0.0
    %150 = vmatpush1.msra.mxu0 %v109
    %151 = vmatprep.subr.mxu0 0.0
    %152 = vmatpush2.msra.mxu0 0.0
    %153 = vmatprep.subr.mxu0 0.0
    %154 = vmatpush2.msra.mxu0 0.0
    %155 = vmatprep.subr.mxu0 0.0
    %156 = vmatpush2.msra.mxu0 0.0
    %157 = vmatprep.subr.mxu0 0.0
    %158 = vmatpush2.msra.mxu0 0.0
    %159 = vmatprep.subr.mxu0 0.0
    %160 = vmatpush2.msra.mxu0 0.0
    %161 = vmatprep.subr.mxu0 0.0
    %162 = vmatpush2.msra.mxu0 0.0
    %163 = vmatprep.subr.mxu0 0.0
    %164 = vmatpush2.msra.mxu0 0.0
    %165 = vmatprep.subr.mxu0 0.0
    %166 = vmatpush2.msra.mxu0 0.0
    %167 = vmatprep.subr.mxu0 0.0
    %168 = vmatpush2.msra.mxu0 0.0
    %169 = vmatprep.subr.mxu0 0.0
    %170 = vmatpush2.msra.mxu0 0.0
    %171 = vmatprep.subr.mxu0 0.0
    %172 = vmatpush2.msra.mxu0 0.0
    %173 = vmatprep.subr.mxu0 0.0
    %174 = vmatpush2.msra.mxu0 0.0
    %175 = vmatprep.subr.mxu0 0.0
    %176 = vmatpush2.msra.mxu0 0.0
    %177 = vmatprep.subr.mxu0 0.0
    %178 = vmatpush2.msra.mxu0 0.0
    %179 = vmatprep.subr.mxu0 0.0
    %180 = vmatpush2.msra.mxu0 0.0
    %181 = vmatprep.subr.mxu0 0.0
    %182 = vmatpush2.msra.mxu0 0.0
    %183 = vmatprep.mubr.f32.mxu0 0.0
    %184 = vmatmul.mubr.f32.gmra.mxu0 %v114
    %v185 = vpop.f32.mrf.mxu0
    %v186 = vadd.f32 0.0, %v185
    %v187 = vpop.f32.mrf.mxu0
    %188 = vmatprep.mubr.f32.mxu0 0.0
    %189 = vmatmul.mubr.f32.gmra.mxu0 %v117
    %v190 = vpop.f32.mrf.mxu0
    %v191 = vadd.f32 0.0, %v190
    %v192 = vpop.f32.mrf.mxu0
    %193 = vdwg.mxu0
    %v196 = vunpack.c.l.s4 1966171168
    %v197 = vunpack.c.0.s8 %v196
    %v198 = vlaneseq
    %v199 = vshrl.u32 %v198, 7
    %v200 = vsub.s32 %v197, %v199
    %v201 = vrot.slane %v106, %v200
    %v202 = vcombine.high %v201, %v201
    %v204 = vunpack.c.l.s4 1966171168
    %v205 = vunpack.c.0.s8 %v204
    %v206 = vlaneseq
    %v207 = vshrl.u32 %v206, 7
    %v208 = vsub.s32 %v205, %v207
    %v209 = vrot.slane %v201, %v208
    %v211 = vunpack.c.l.s4 1966171168
    %v212 = vunpack.c.0.s8 %v211
    %v213 = vlaneseq
    %v214 = vshrl.u32 %v213, 7
    %v215 = vsub.s32 %v212, %v214
    %v216 = vrot.slane %v202, %v215
    %v217 = vlaneseq
    %v218 = vshrl.u32 %v217, 7
    %v219 = vsub.s32 0, %v218
    %v220 = vrot.slane %v209, %v219
    %v221 = vlaneseq
    %v222 = vshrl.u32 %v221, 7
    %v223 = vsub.s32 0, %v222
    %v224 = vrot.slane %v216, %v223
    %v227 = vadd.f32 %v186, %v220
    %v228 = vadd.f32 %v191, %v224
    %v229 = vtanh.pop %v227
    %v230 = vtanh.pop %v228
    %v231 = vld [vmem:[%s5] sm:$0x1]
    %v233 = vlaneseq
    %v234 = vshrl.u32 %v233, 7
    %v235 = vsub.s32 0, %v234
    %v236 = vrot.slane %v231, %v235
    %v238 = vmul.f32 %v229, %v236
    %v239 = vmul.f32 %v230, %v236
    %vm240 = vcmask 130048
    %v241 = vsel %vm240, %v238, 0.0
    %242 = vadd.xlane.f32.xlu0 %v241
    %v243 = vpop.xlane.xlu0 %242
    %v244 = vsel %vm240, %v239, 0.0
    %245 = vadd.xlane.f32.xlu0 %v244
    %v246 = vpop.xlane.xlu0 %245
    %vm247 = vcmp.eq.f32.partialorder %v30, 0.0
    %v248 = vsel %vm247, -1e+08, %v30
    %v250 = vlaneseq
    %v251 = vshrl.u32 %v250, 7
    %v252 = vsub.s32 0, %v251
    %v253 = vrot.slane %v248, %v252
    %255 = vbcast.lane.b32.xlu0 %v253, 256
    %v256 = vpop.permute.xlu0 %255
    %v257 = vlaneseq
    %v258 = vshrl.u32 %v257, 7
    %v259 = vsub.s32 1, %v258
    %v260 = vrot.slane %v248, %v259
    %262 = vbcast.lane.b32.xlu0 %v260, 256
    %v263 = vpop.permute.xlu0 %262
    %v266 = vmul.f32 %v243, %v256
    %v267 = vmul.f32 %v246, %v263
    %270 = vset.pattern.permute.xlu0 0
    %271 = vperm.xlu0 %270, %v266
    %v272 = vpop.permute.xlu0 %271
    %273 = vset.pattern.permute.xlu0 0
    %274 = vperm.xlu0 %273, %v267
    %v275 = vpop.permute.xlu0 %274
    %v276 = vlaneseq
    %v277 = vand.u32 %v276, 127
    %v278 = vlaneseq
    %v279 = vshrl.u32 %v278, 7
    %v280 = vsub.s32 %v277, %v279
    %v281 = vrot.slane %v272, %v280
    %v282 = vlaneseq
    %v283 = vshrl.u32 %v282, 7
    %v284 = vsub.s32 %v277, %v283
    %v285 = vrot.slane %v275, %v284
    %vm286 = vcmask 1041409
    %v287 = vsel %vm286, %v285, %v281
    %vm289 = vcmask 58368
    %v290 = vsel %vm289, %v287, -inf
    %291 = vmax.xlane.f32.xlu0 %v290
    %v292 = vpop.xlane.xlu0 %291
    %v294 = vlaneseq
    %v295 = vshrl.u32 %v294, 7
    %v296 = vsub.s32 0, %v295
    %v297 = vrot.slane %v292, %v296
    %v298 = vlaneseq
    %v299 = vshrl.u32 %v298, 7
    %v300 = vsub.s32 1, %v299
    %v301 = vrot.slane %v292, %v300
    %v304 = vsub.f32 %v266, %v297
    %v305 = vsub.f32 %v267, %v301
    %v306 = vmul.f32 %v304, 1.442695
    %v307 = vpow.pop %v306
    %v308 = vmul.f32 %v305, 1.442695
    %v309 = vpow.pop %v308
    %312 = vset.pattern.permute.xlu0 0
    %313 = vperm.xlu0 %312, %v307
    %v314 = vpop.permute.xlu0 %313
    %315 = vset.pattern.permute.xlu0 0
    %316 = vperm.xlu0 %315, %v309
    %v317 = vpop.permute.xlu0 %316
    %v318 = vlaneseq
    %v319 = vshrl.u32 %v318, 7
    %v320 = vsub.s32 %v277, %v319
    %v321 = vrot.slane %v314, %v320
    %v322 = vlaneseq
    %v323 = vshrl.u32 %v322, 7
    %v324 = vsub.s32 %v277, %v323
    %v325 = vrot.slane %v317, %v324
    %v326 = vsel %vm286, %v325, %v321
    %v328 = vsel %vm289, %v326, 0.0
    %329 = vadd.xlane.f32.xlu0 %v328
    %v330 = vpop.xlane.xlu0 %329
    %v331 = vrcp.pop %v330
    %v333 = vlaneseq
    %v334 = vshrl.u32 %v333, 7
    %v335 = vsub.s32 0, %v334
    %v336 = vrot.slane %v331, %v335
    %v337 = vlaneseq
    %v338 = vshrl.u32 %v337, 7
    %v339 = vsub.s32 1, %v338
    %v340 = vrot.slane %v331, %v339
    %v343 = vmul.f32 %v307, %v336
    %v344 = vmul.f32 %v309, %v340
    %347 = vset.pattern.permute.xlu0 0
    %348 = vperm.xlu0 %347, %v343
    %v349 = vpop.permute.xlu0 %348
    %350 = vset.pattern.permute.xlu0 0
    %351 = vperm.xlu0 %350, %v344
    %v352 = vpop.permute.xlu0 %351
    %v353 = vlaneseq
    %v354 = vshrl.u32 %v353, 7
    %v355 = vsub.s32 %v277, %v354
    %v356 = vrot.slane %v349, %v355
    %v357 = vlaneseq
    %v358 = vshrl.u32 %v357, 7
    %v359 = vsub.s32 %v277, %v358
    %v360 = vrot.slane %v352, %v359
    %v361 = vsel %vm286, %v360, %v356
    %363 = vst.msk [vmem:[#allocation2] sm:$0x3] %vm289, %v361
    %vm364 = vcmask 64512
    %v365 = vsel %vm364, %v356, 0
    %367 = vmatprep.subr.mxu0 0.0
    %368 = vmatpush1.msra.mxu0 0.0
    %369 = vmatprep.subr.mxu0 0.0
    %370 = vmatpush1.msra.mxu0 0.0
    %371 = vmatprep.subr.mxu0 0.0
    %372 = vmatpush1.msra.mxu0 0.0
    %373 = vmatprep.subr.mxu0 0.0
    %374 = vmatpush1.msra.mxu0 0.0
    %375 = vmatprep.subr.mxu0 0.0
    %376 = vmatpush1.msra.mxu0 0.0
    %377 = vmatprep.subr.mxu0 0.0
    %378 = vmatpush1.msra.mxu0 0.0
    %379 = vmatprep.subr.mxu0 0.0
    %380 = vmatpush1.msra.mxu0 0.0
    %381 = vmatprep.subr.mxu0 0.0
    %382 = vmatpush1.msra.mxu0 0.0
    %383 = vmatprep.subr.mxu0 0.0
    %384 = vmatpush1.msra.mxu0 0.0
    %385 = vmatprep.subr.mxu0 0.0
    %386 = vmatpush1.msra.mxu0 0.0
    %387 = vmatprep.subr.mxu0 0.0
    %388 = vmatpush1.msra.mxu0 0.0
    %389 = vmatprep.subr.mxu0 0.0
    %390 = vmatpush1.msra.mxu0 0.0
    %391 = vmatprep.subr.mxu0 0.0
    %392 = vmatpush1.msra.mxu0 0.0
    %393 = vmatprep.subr.mxu0 0.0
    %394 = vmatpush1.msra.mxu0 0.0
    %395 = vmatprep.subr.mxu0 0.0
    %396 = vmatpush1.msra.mxu0 0.0
    %397 = vmatprep.subr.mxu0 0.0
    %398 = vmatpush1.msra.mxu0 %v27
    %399 = vmatprep.subr.mxu0 0.0
    %400 = vmatpush2.msra.mxu0 0.0
    %401 = vmatprep.subr.mxu0 0.0
    %402 = vmatpush2.msra.mxu0 0.0
    %403 = vmatprep.subr.mxu0 0.0
    %404 = vmatpush2.msra.mxu0 0.0
    %405 = vmatprep.subr.mxu0 0.0
    %406 = vmatpush2.msra.mxu0 0.0
    %407 = vmatprep.subr.mxu0 0.0
    %408 = vmatpush2.msra.mxu0 0.0
    %409 = vmatprep.subr.mxu0 0.0
    %410 = vmatpush2.msra.mxu0 0.0
    %411 = vmatprep.subr.mxu0 0.0
    %412 = vmatpush2.msra.mxu0 0.0
    %413 = vmatprep.subr.mxu0 0.0
    %414 = vmatpush2.msra.mxu0 0.0
    %415 = vmatprep.subr.mxu0 0.0
    %416 = vmatpush2.msra.mxu0 0.0
    %417 = vmatprep.subr.mxu0 0.0
    %418 = vmatpush2.msra.mxu0 0.0
    %419 = vmatprep.subr.mxu0 0.0
    %420 = vmatpush2.msra.mxu0 0.0
    %421 = vmatprep.subr.mxu0 0.0
    %422 = vmatpush2.msra.mxu0 0.0
    %423 = vmatprep.subr.mxu0 0.0
    %424 = vmatpush2.msra.mxu0 0.0
    %425 = vmatprep.subr.mxu0 0.0
    %426 = vmatpush2.msra.mxu0 0.0
    %427 = vmatprep.subr.mxu0 0.0
    %428 = vmatpush2.msra.mxu0 0.0
    %429 = vmatprep.subr.mxu0 0.0
    %430 = vmatpush2.msra.mxu0 0.0
    %431 = vmatprep.mubr.f32.mxu0 0.0
    %432 = vmatmul.mubr.f32.gmra.mxu0 %v365
    %v433 = vpop.f32.mrf.mxu0
    %v434 = vadd.f32 0.0, %v433
    %v435 = vpop.f32.mrf.mxu0
    %436 = vdwg.mxu0
    %v437 = vsel %vm364, %v360, 0
    %439 = vmatprep.subr.mxu0 0.0
    %440 = vmatpush1.msra.mxu0 0.0
    %441 = vmatprep.subr.mxu0 0.0
    %442 = vmatpush1.msra.mxu0 0.0
    %443 = vmatprep.subr.mxu0 0.0
    %444 = vmatpush1.msra.mxu0 0.0
    %445 = vmatprep.subr.mxu0 0.0
    %446 = vmatpush1.msra.mxu0 0.0
    %447 = vmatprep.subr.mxu0 0.0
    %448 = vmatpush1.msra.mxu0 0.0
    %449 = vmatprep.subr.mxu0 0.0
    %450 = vmatpush1.msra.mxu0 0.0
    %451 = vmatprep.subr.mxu0 0.0
    %452 = vmatpush1.msra.mxu0 0.0
    %453 = vmatprep.subr.mxu0 0.0
    %454 = vmatpush1.msra.mxu0 0.0
    %455 = vmatprep.subr.mxu0 0.0
    %456 = vmatpush1.msra.mxu0 0.0
    %457 = vmatprep.subr.mxu0 0.0
    %458 = vmatpush1.msra.mxu0 0.0
    %459 = vmatprep.subr.mxu0 0.0
    %460 = vmatpush1.msra.mxu0 0.0
    %461 = vmatprep.subr.mxu0 0.0
    %462 = vmatpush1.msra.mxu0 0.0
    %463 = vmatprep.subr.mxu0 0.0
    %464 = vmatpush1.msra.mxu0 0.0
    %465 = vmatprep.subr.mxu0 0.0
    %466 = vmatpush1.msra.mxu0 0.0
    %467 = vmatprep.subr.mxu0 0.0
    %468 = vmatpush1.msra.mxu0 0.0
    %469 = vmatprep.subr.mxu0 0.0
    %470 = vmatpush1.msra.mxu0 %v28
    %471 = vmatprep.subr.mxu0 0.0
    %472 = vmatpush2.msra.mxu0 0.0
    %473 = vmatprep.subr.mxu0 0.0
    %474 = vmatpush2.msra.mxu0 0.0
    %475 = vmatprep.subr.mxu0 0.0
    %476 = vmatpush2.msra.mxu0 0.0
    %477 = vmatprep.subr.mxu0 0.0
    %478 = vmatpush2.msra.mxu0 0.0
    %479 = vmatprep.subr.mxu0 0.0
    %480 = vmatpush2.msra.mxu0 0.0
    %481 = vmatprep.subr.mxu0 0.0
    %482 = vmatpush2.msra.mxu0 0.0
    %483 = vmatprep.subr.mxu0 0.0
    %484 = vmatpush2.msra.mxu0 0.0
    %485 = vmatprep.subr.mxu0 0.0
    %486 = vmatpush2.msra.mxu0 0.0
    %487 = vmatprep.subr.mxu0 0.0
    %488 = vmatpush2.msra.mxu0 0.0
    %489 = vmatprep.subr.mxu0 0.0
    %490 = vmatpush2.msra.mxu0 0.0
    %491 = vmatprep.subr.mxu0 0.0
    %492 = vmatpush2.msra.mxu0 0.0
    %493 = vmatprep.subr.mxu0 0.0
    %494 = vmatpush2.msra.mxu0 0.0
    %495 = vmatprep.subr.mxu0 0.0
    %496 = vmatpush2.msra.mxu0 0.0
    %497 = vmatprep.subr.mxu0 0.0
    %498 = vmatpush2.msra.mxu0 0.0
    %499 = vmatprep.subr.mxu0 0.0
    %500 = vmatpush2.msra.mxu0 0.0
    %501 = vmatprep.subr.mxu0 0.0
    %502 = vmatpush2.msra.mxu0 0.0
    %503 = vmatprep.mubr.f32.mxu0 0.0
    %504 = vmatmul.mubr.f32.gmra.mxu0 %v437
    %v505 = vpop.f32.mrf.mxu0
    %v506 = vadd.f32 0.0, %v505
    %v507 = vpop.f32.mrf.mxu0
    %508 = vdwg.mxu0
    %v511 = vrot.slane %v506, 7
    %v512 = vsel %vm286, %v511, %v434
    %vm514 = vcmask 254976
    %515 = vst.msk [vmem:[#allocation4] sm:$0x3] %vm514, %v512
    // Predicated region
    $region26: #{cat_attention.1} parent=1 // pred_check
      _
    $region27: #{cat_attention.1} parent=1 // pred_check_branch
      %517 = sbr.rel (0) target = $region29
    $region28: #{cat_attention.1} parent=1 // pred_region
      %s519 = ssub.s32 32, 32
      %520 = vsyncadd [#allocation3], %s519
      %s522 = sshll.u32 [#allocation2], 4
      %s523 = int_to_ptr.vmem [resolvable:$true] %s522
      %525 = dma.vmem_to_hbm [thread:$0]  %s523, 32, %s6, [#allocation3]
    $region29: #{cat_attention.1} parent=1 // pred_fallthru
      _
    // Predicated region
    $region30: #{cat_attention.1} parent=1 // pred_check
      _
    $region31: #{cat_attention.1} parent=1 // pred_check_branch
      %527 = sbr.rel (0) target = $region33
    $region32: #{cat_attention.1} parent=1 // pred_region
      %s529 = ssub.s32 32, 32
      %530 = vsyncadd [#allocation5], %s529
      %s532 = sshll.u32 [#allocation4], 4
      %s533 = int_to_ptr.vmem [resolvable:$true] %s532
      %535 = dma.vmem_to_hbm [thread:$0]  %s533, 32, %s7, [#allocation5]
    $region33: #{cat_attention.1} parent=1 // pred_fallthru
      _
    // Predicated region
    $region34: #{cat_attention.1} parent=1 // pred_check
      _
    $region35: #{cat_attention.1} parent=1 // pred_check_branch
      %537 = sbr.rel (0) target = $region37
    $region36: #{cat_attention.1} parent=1 // pred_region
      %538 = dma.done [#allocation3], 32
    $region37: #{cat_attention.1} parent=1 // pred_fallthru
      _
    // Predicated region
    $region38: #{cat_attention.1} parent=1 // pred_check
      _
    $region39: #{cat_attention.1} parent=1 // pred_check_branch
      %540 = sbr.rel (0) target = $region41
    $region40: #{cat_attention.1} parent=1 // pred_region
      %541 = dma.done [#allocation5], 32
    $region41: #{cat_attention.1} parent=1 // pred_fallthru
      _
    %542 = vsyncpa [#allocation3], 1
    %543 = vsyncpa [#allocation5], 1

</llo_original>
